<compile_context>
chip_gen: v7x
topology: tpu7x:2x2x1
jax: 0.10.0
libtpu: 0.0.40
codegen_flags: <defaults>
</compile_context>

<pallas_src>
import functools

import jax
import jax.numpy as jnp
from jax import lax
from jax.experimental import pallas as pl
from jax.experimental.pallas import tpu as pltpu

EPS = 1e-7
_LANES = 128
_SUB = 8
_CHUNK = 32   # rows per inner chunk: one int8 vreg of mask, two bf16 / four f32 vregs of probs


def _dice_partial_kernel(probs_ref, mask_ref, acc_ref, *,
                         n_classes, k_total, rows_valid, has_tail):
    """One (batch, split, k) grid step of the streaming dice reduction.

    probs_ref: (1, C, TR, 128)      activation tile in its native float dtype.
    mask_ref:  (1, TR, 128)         integer class labels.
    acc_ref:   (1, 1, 3*C, 8, 128)  resident f32 accumulator:
               slots [0:C)=num, [C:2C)=den1, [2C:3C)=den2 partial sums.
    """
    C = n_classes
    TR = probs_ref.shape[2]
    n_chunks = TR // _CHUNK

    k = pl.program_id(2)
    split = pl.program_id(1)
    k_global = split * pl.num_programs(2) + k

    @pl.when(k == 0)
    def _():
        acc_ref[...] = jnp.zeros(acc_ref.shape, acc_ref.dtype)

    @pl.when(k_global < k_total)            # skip the padded step of a 2-way K split
    def _():
        def chunk_body(j, accs):
            accs = list(accs)
            base = pl.multiple_of(j * _CHUNK, _CHUNK)
            m = mask_ref[0, pl.ds(base, _CHUNK), :].astype(jnp.int32)     # (32, 128)

            if has_tail:
                rows = (k_global * TR + base
                        + lax.broadcasted_iota(jnp.int32, (_CHUNK, _LANES), 0))
                valid = rows < rows_valid
                m = jnp.where(valid, m, -1)     # -1 matches no class -> num/den2 safe

            for c in range(C):
                x = probs_ref[0, c, pl.ds(base, _CHUNK), :].astype(jnp.float32)
                if has_tail:
                    x = jnp.where(valid, x, 0.0)    # keep garbage rows out of den1
                m_eq = m == c
                num_p = jnp.where(m_eq, x, 0.0)
                den1_p = x * x
                den2_p = jnp.where(m_eq, jnp.float32(1.0), jnp.float32(0.0))
                # (32,128) -> (8,128) with pure vreg adds (no XLU reduce per chunk).
                accs[c] = accs[c] + jnp.sum(
                    num_p.reshape(_CHUNK // _SUB, _SUB, _LANES), axis=0)
                accs[C + c] = accs[C + c] + jnp.sum(
                    den1_p.reshape(_CHUNK // _SUB, _SUB, _LANES), axis=0)
                accs[2 * C + c] = accs[2 * C + c] + jnp.sum(
                    den2_p.reshape(_CHUNK // _SUB, _SUB, _LANES), axis=0)
            return tuple(accs)

        init = tuple(jnp.zeros((_SUB, _LANES), jnp.float32) for _ in range(3 * C))
        unroll = True if n_chunks <= 8 else 4
        accs = lax.fori_loop(0, n_chunks, chunk_body, init, unroll=unroll)

        for idx in range(3 * C):                # single writeback per grid step
            acc_ref[0, 0, idx] += accs[idx]


def _vmem_capacity_bytes(default=64 << 20):
    try:
        info = pltpu.get_tpu_info()
        for name in ("vmem_capacity_bytes", "vmem_bytes", "vmem_size_bytes"):
            v = getattr(info, name, None)
            if isinstance(v, int) and v > 0:
                return v
    except Exception:
        pass
    return default


def dice_loss_multiclass_with_bg(output, mask, *, max_tile_bytes=None):
    """output: (N, C, D, H, W) float (f32/bf16/f16); mask: (N, D, H, W) or (N, 1, D, H, W) int.

    Returns (loss[N], tuple of C per-class dice[N]) matching DICELossMultiClasswithBG."""
    N, C, D, H, W = output.shape
    if mask.ndim == 5:
        mask = mask[:, 0]
    S = D * H * W

    # Stream the activation's native dtype; per-tile cast to f32 happens inside the kernel.
    if output.dtype == jnp.float64:
        output = output.astype(jnp.float32)
    probs = output.reshape(N, C, S)                              # zero-copy

    # Small integer labels; clip so out-of-range ids never wrap into [0, C) after narrowing.
    if C <= 126:
        lbl = jnp.clip(mask.astype(jnp.int32), -1, C).astype(jnp.int8).reshape(N, S)
    else:
        lbl = mask.astype(jnp.int32).reshape(N, S)

    # Lane-dense view of the spatial volume: S -> (rows, 128).
    if S % _LANES == 0:
        rows = S // _LANES
        probs_r = probs.reshape(N, C, rows, _LANES)              # zero-copy, no HBM pad pass
        lbl_r = lbl.reshape(N, rows, _LANES)
    else:
        # TODO(synk): ragged lane tail (S % 128 != 0) falls back to a pad = one extra HBM pass.
        rows = pl.cdiv(S, _LANES)
        pad = rows * _LANES - S
        probs_r = jnp.pad(probs, ((0, 0), (0, 0), (0, pad))).reshape(N, C, rows, _LANES)
        lbl_r = jnp.pad(lbl, ((0, 0), (0, pad)), constant_values=-1).reshape(N, rows, _LANES)

    if rows < _CHUNK:                                            # tiny volumes only
        pad_r = _CHUNK - rows
        probs_r = jnp.pad(probs_r, ((0, 0), (0, 0), (0, pad_r), (0, 0)))
        lbl_r = jnp.pad(lbl_r, ((0, 0), (0, pad_r), (0, 0)), constant_values=-1)
        rows = _CHUNK

    # Generation-aware tile size: big enough to amortize per-step overhead, small enough
    # that the double-buffered working set fits v7x's 64 MiB VMEM (128 MiB on v5e/v6e).
    itemsize = jnp.dtype(probs_r.dtype).itemsize
    vmem_cap = _vmem_capacity_bytes()
    tile_target = (max_tile_bytes if max_tile_bytes is not None
                   else min(8 << 20, max(1 << 20, vmem_cap // 12)))
    tr_cap = max(_CHUNK, (tile_target // (C * _LANES * itemsize)) // _CHUNK * _CHUNK)
    TR = min(tr_cap, rows // _CHUNK * _CHUNK)
    K_total = pl.cdiv(rows, TR)
    has_tail = (rows % TR) != 0

    # Batch-1 3D volumes: split the row reduction 2-way so both v7x TensorCores get work
    # (harmless grid split on single-core chips).
    NS = 2 if (N == 1 and K_total >= 2) else 1
    K_per = pl.cdiv(K_total, NS)

    probs_tile_b = C * TR * _LANES * itemsize
    mask_tile_b = TR * _LANES * jnp.dtype(lbl_r.dtype).itemsize
    acc_b = 3 * C * _SUB * _LANES * 4
    need = 2 * (probs_tile_b + mask_tile_b + acc_b) + (2 << 20)
    vmem_limit = int(min(max(2 * need, 32 << 20), max(vmem_cap - (8 << 20), 32 << 20)))

    kernel = functools.partial(_dice_partial_kernel, n_classes=C, k_total=K_total,
                               rows_valid=rows, has_tail=has_tail)

    def _blk(s, k):   # row-block index; clamp the (skipped) padded step of a K split
        return jnp.minimum(s * K_per + k, K_total - 1)

    partial_sums = pl.pallas_call(
        kernel,
        out_shape=jax.ShapeDtypeStruct((N, NS, 3 * C, _SUB, _LANES), jnp.float32),
        grid_spec=pltpu.PrefetchScalarGridSpec(
            num_scalar_prefetch=0,
            grid=(N, NS, K_per),
            in_specs=[
                pl.BlockSpec((1, C, TR, _LANES), lambda n, s, k: (n, 0, _blk(s, k), 0)),
                pl.BlockSpec((1, TR, _LANES), lambda n, s, k: (n, _blk(s, k), 0)),
            ],
            out_specs=pl.BlockSpec((1, 1, 3 * C, _SUB, _LANES),
                                   lambda n, s, k: (n, s, 0, 0, 0)),
        ),
        compiler_params=pltpu.CompilerParams(
            dimension_semantics=("parallel", "parallel", "arbitrary"),
            vmem_limit_bytes=vmem_limit),
    )(probs_r, lbl_r)

    # Tiny finalization in plain JAX: cross-lane/split reduce + dice formula.
    sums = jnp.sum(partial_sums, axis=(1, 3, 4)).reshape(N, 3, C)
    num, den1, den2 = sums[:, 0, :], sums[:, 1, :], sums[:, 2, :]
    dice = -2.0 * ((num + EPS) / (den1 + den2 + EPS))            # (N, C)
    loss = jnp.sum(dice, axis=1) / C
    loss_list = tuple(dice[:, i] for i in range(C))
    return loss, loss_list


def _ref_dice_loss(output, mask):
    """Pure-JAX reference of the PyTorch module."""
    N, C = output.shape[:2]
    if mask.ndim == 5:
        mask = mask[:, 0]
    probs = output.astype(jnp.float32)
    dices = []
    for i in range(C):
        p = probs[:, i]
        mi = (mask == i).astype(jnp.float32)
        num = jnp.sum(p * mi, axis=(1, 2, 3))
        den1 = jnp.sum(p * p, axis=(1, 2, 3))
        den2 = jnp.sum(mi * mi, axis=(1, 2, 3))
        dices.append(-2.0 * ((num + EPS) / (den1 + den2 + EPS)))
    dice = jnp.stack(dices, axis=1)
    return jnp.sum(dice, axis=1) / C, tuple(dices)


if __name__ == "__main__":
    key = jax.random.PRNGKey(0)

    def check(output, mask, **kw):
        loss, dice_list = dice_loss_multiclass_with_bg(output, mask, **kw)
        loss = jax.block_until_ready(loss)
        ref_loss, ref_list = _ref_dice_loss(output, mask)
        assert bool(jnp.all(jnp.isfinite(loss))), "loss is not finite"
        assert jnp.allclose(loss, ref_loss, rtol=1e-4, atol=1e-5), (loss, ref_loss)
        for d, r in zip(dice_list, ref_list):
            assert jnp.allclose(d, r, rtol=1e-4, atol=1e-5), (d, r)

    # 1) f32, multi-step grid with a ragged row tail (in-kernel iota masking path).
    k1, k2, key = jax.random.split(key, 3)
    N, C, D, H, W = 2, 4, 5, 16, 128
    out = jax.nn.softmax(jax.random.normal(k1, (N, C, D, H, W), jnp.float32), axis=1)
    msk = jax.random.randint(k2, (N, D, H, W), 0, C, dtype=jnp.int32)
    check(out, msk, max_tile_bytes=64 * 1024)

    # 2) batch-1: exercises the 2-way K split across TensorCores + the skip guard.
    k1, k2, key = jax.random.split(key, 3)
    N, C, D, H, W = 1, 3, 5, 16, 128
    out = jax.nn.softmax(jax.random.normal(k1, (N, C, D, H, W), jnp.float32), axis=1)
    msk = jax.random.randint(k2, (N, 1, D, H, W), 0, C, dtype=jnp.int32)
    check(out, msk, max_tile_bytes=48 * 1024)

    # 3) bf16 activations streamed in native dtype; tiny volume (row-pad path), auto tile.
    k1, k2, key = jax.random.split(key, 3)
    N, C, D, H, W = 2, 4, 8, 16, 16
    out = jax.nn.softmax(jax.random.normal(k1, (N, C, D, H, W), jnp.float32), axis=1)
    out = out.astype(jnp.bfloat16)
    msk = jax.random.randint(k2, (N, D, H, W), 0, C, dtype=jnp.int32)
    check(out, msk)

    print("KERNEL_OK")
</pallas_src>

<mosaic_0001>
module attributes {stable_mosaic.version = 11 : i64} {
  func.func @_dice_partial_kernel(%arg0: i32, %arg1: i32, %arg2: i32, %arg3: memref<1x4x32x128xf32, #tpu.memory_space<vmem>>, %arg4: memref<1x32x128xi8, #tpu.memory_space<vmem>>, %arg5: memref<1x1x12x8x128xf32, #tpu.memory_space<vmem>>) attributes {dimension_semantics = [#tpu.dimension_semantics<parallel>, #tpu.dimension_semantics<parallel>, #tpu.dimension_semantics<arbitrary>], iteration_bounds = array<i64: 2, 1, 3>, scalar_prefetch = 0 : i64, scratch_operands = 0 : i64, tpu.core_type = #tpu.core_type<tc>, window_params = [{transform_indices = @transform_0, window_bounds = array<i64: 1, 4, 32, 128>}, {transform_indices = @transform_1, window_bounds = array<i64: 1, 32, 128>}, {transform_indices = @transform_2, window_bounds = array<i64: 1, 1, 12, 8, 128>}]} {
    %c3_i32 = arith.constant 3 : i32
    %0 = arith.muli %arg1, %c3_i32 : i32
    %1 = arith.addi %0, %arg2 : i32
    %c0_i32 = arith.constant 0 : i32
    %2 = arith.cmpi eq, %arg2, %c0_i32 : i32
    %3 = arith.extui %2 : i1 to i32
    %c0_i32_0 = arith.constant 0 : i32
    %4 = arith.cmpi ne, %3, %c0_i32_0 : i32
    scf.if %4 {
      %cst = arith.constant 0.000000e+00 : f32
      %8 = vector.broadcast %cst : f32 to vector<1x1x12x8x128xf32>
      %c0 = arith.constant 0 : index
      %c0_3 = arith.constant 0 : index
      %c0_4 = arith.constant 0 : index
      %c0_5 = arith.constant 0 : index
      %c0_6 = arith.constant 0 : index
      %9 = vector.load %arg5[%c0, %c0_3, %c0_4, %c0_5, %c0_6] : memref<1x1x12x8x128xf32, #tpu.memory_space<vmem>>, vector<1x1x12x8x128xf32>
      tpu.vector_store %arg5[%c0, %c0_3, %c0_4, %c0_5, %c0_6], %8 {strides = array<i32>} : memref<1x1x12x8x128xf32, #tpu.memory_space<vmem>>, vector<1x1x12x8x128xf32>,
    } else {
    }
    %c3_i32_1 = arith.constant 3 : i32
    %5 = arith.cmpi slt, %1, %c3_i32_1 : i32
    %6 = arith.extui %5 : i1 to i32
    %c0_i32_2 = arith.constant 0 : i32
    %7 = arith.cmpi ne, %6, %c0_i32_2 : i32
    scf.if %7 {
      %cst = arith.constant 0.000000e+00 : f32
      %8 = vector.broadcast %cst : f32 to vector<8x128xf32>
      %cst_3 = arith.constant 0.000000e+00 : f32
      %9 = vector.broadcast %cst_3 : f32 to vector<8x128xf32>
      %cst_4 = arith.constant 0.000000e+00 : f32
      %10 = vector.broadcast %cst_4 : f32 to vector<8x128xf32>
      %cst_5 = arith.constant 0.000000e+00 : f32
      %11 = vector.broadcast %cst_5 : f32 to vector<8x128xf32>
      %cst_6 = arith.constant 0.000000e+00 : f32
      %12 = vector.broadcast %cst_6 : f32 to vector<8x128xf32>
      %cst_7 = arith.constant 0.000000e+00 : f32
      %13 = vector.broadcast %cst_7 : f32 to vector<8x128xf32>
      %cst_8 = arith.constant 0.000000e+00 : f32
      %14 = vector.broadcast %cst_8 : f32 to vector<8x128xf32>
      %cst_9 = arith.constant 0.000000e+00 : f32
      %15 = vector.broadcast %cst_9 : f32 to vector<8x128xf32>
      %cst_10 = arith.constant 0.000000e+00 : f32
      %16 = vector.broadcast %cst_10 : f32 to vector<8x128xf32>
      %cst_11 = arith.constant 0.000000e+00 : f32
      %17 = vector.broadcast %cst_11 : f32 to vector<8x128xf32>
      %cst_12 = arith.constant 0.000000e+00 : f32
      %18 = vector.broadcast %cst_12 : f32 to vector<8x128xf32>
      %cst_13 = arith.constant 0.000000e+00 : f32
      %19 = vector.broadcast %cst_13 : f32 to vector<8x128xf32>
      %c0_i32_14 = arith.constant 0 : i32
      %c32_i32 = arith.constant 32 : i32
      %20 = arith.muli %c0_i32_14, %c32_i32 : i32
      %21 = tpu.assume_multiple %20, 32 : i32
      %c0 = arith.constant 0 : index
      %22 = arith.index_cast %21 : i32 to index
      %c0_15 = arith.constant 0 : index
      %23 = vector.load %arg4[%c0, %22, %c0_15] : memref<1x32x128xi8, #tpu.memory_space<vmem>>, vector<1x32x128xi8>
      %24 = vector.shape_cast %23 : vector<1x32x128xi8> to vector<32x128xi8>
      %25 = arith.extsi %24 : vector<32x128xi8> to vector<32x128xi32>
      %c32_i32_16 = arith.constant 32 : i32
      %26 = arith.muli %1, %c32_i32_16 : i32
      %27 = arith.addi %26, %21 : i32
      %28 = tpu.iota {dimensions = array<i32: 0>} : vector<32x128xi32>
      %29 = vector.broadcast %27 : i32 to vector<32x128xi32>
      %30 = arith.addi %29, %28 : vector<32x128xi32>
      %c80_i32 = arith.constant 80 : i32
      %31 = vector.broadcast %c80_i32 : i32 to vector<32x128xi32>
      %32 = arith.cmpi slt, %30, %31 : vector<32x128xi32>
      %c-1_i32 = arith.constant -1 : i32
      %33 = vector.broadcast %c-1_i32 : i32 to vector<32x128xi32>
      %34 = arith.select %32, %25, %33 : vector<32x128xi1>, vector<32x128xi32>
      %c0_17 = arith.constant 0 : index
      %c0_18 = arith.constant 0 : index
      %35 = arith.index_cast %21 : i32 to index
      %c0_19 = arith.constant 0 : index
      %36 = vector.load %arg3[%c0_17, %c0_18, %35, %c0_19] : memref<1x4x32x128xf32, #tpu.memory_space<vmem>>, vector<1x1x32x128xf32>
      %37 = vector.shape_cast %36 : vector<1x1x32x128xf32> to vector<32x128xf32>
      %cst_20 = arith.constant 0.000000e+00 : f32
      %38 = vector.broadcast %cst_20 : f32 to vector<32x128xf32>
      %39 = arith.select %32, %37, %38 : vector<32x128xi1>, vector<32x128xf32>
      %c0_i32_21 = arith.constant 0 : i32
      %40 = vector.broadcast %c0_i32_21 : i32 to vector<32x128xi32>
      %41 = arith.cmpi eq, %34, %40 : vector<32x128xi32>
      %cst_22 = arith.constant 0.000000e+00 : f32
      %42 = vector.broadcast %cst_22 : f32 to vector<32x128xf32>
      %43 = arith.select %41, %39, %42 : vector<32x128xi1>, vector<32x128xf32>
      %44 = arith.mulf %39, %39 : vector<32x128xf32>
      %cst_23 = arith.constant 1.000000e+00 : f32
      %cst_24 = arith.constant 0.000000e+00 : f32
      %45 = vector.broadcast %cst_23 : f32 to vector<32x128xf32>
      %46 = vector.broadcast %cst_24 : f32 to vector<32x128xf32>
      %47 = arith.select %41, %45, %46 : vector<32x128xi1>, vector<32x128xf32>
      %48 = vector.shape_cast %43 : vector<32x128xf32> to vector<4x8x128xf32>
      %cst_25 = arith.constant dense<0.000000e+00> : vector<8x128xf32>
      %49 = vector.multi_reduction <add>, %48, %cst_25 [0] : vector<4x8x128xf32> to vector<8x128xf32>
      %50 = arith.addf %8, %49 : vector<8x128xf32>
      %51 = vector.shape_cast %44 : vector<32x128xf32> to vector<4x8x128xf32>
      %cst_26 = arith.constant dense<0.000000e+00> : vector<8x128xf32>
      %52 = vector.multi_reduction <add>, %51, %cst_26 [0] : vector<4x8x128xf32> to vector<8x128xf32>
      %53 = arith.addf %12, %52 : vector<8x128xf32>
      %54 = vector.shape_cast %47 : vector<32x128xf32> to vector<4x8x128xf32>
      %cst_27 = arith.constant dense<0.000000e+00> : vector<8x128xf32>
      %55 = vector.multi_reduction <add>, %54, %cst_27 [0] : vector<4x8x128xf32> to vector<8x128xf32>
      %56 = arith.addf %16, %55 : vector<8x128xf32>
      %c0_28 = arith.constant 0 : index
      %c1 = arith.constant 1 : index
      %57 = arith.index_cast %21 : i32 to index
      %c0_29 = arith.constant 0 : index
      %58 = vector.load %arg3[%c0_28, %c1, %57, %c0_29] : memref<1x4x32x128xf32, #tpu.memory_space<vmem>>, vector<1x1x32x128xf32>
      %59 = vector.shape_cast %58 : vector<1x1x32x128xf32> to vector<32x128xf32>
      %cst_30 = arith.constant 0.000000e+00 : f32
      %60 = vector.broadcast %cst_30 : f32 to vector<32x128xf32>
      %61 = arith.select %32, %59, %60 : vector<32x128xi1>, vector<32x128xf32>
      %c1_i32 = arith.constant 1 : i32
      %62 = vector.broadcast %c1_i32 : i32 to vector<32x128xi32>
      %63 = arith.cmpi eq, %34, %62 : vector<32x128xi32>
      %cst_31 = arith.constant 0.000000e+00 : f32
      %64 = vector.broadcast %cst_31 : f32 to vector<32x128xf32>
      %65 = arith.select %63, %61, %64 : vector<32x128xi1>, vector<32x128xf32>
      %66 = arith.mulf %61, %61 : vector<32x128xf32>
      %cst_32 = arith.constant 1.000000e+00 : f32
      %cst_33 = arith.constant 0.000000e+00 : f32
      %67 = vector.broadcast %cst_32 : f32 to vector<32x128xf32>
      %68 = vector.broadcast %cst_33 : f32 to vector<32x128xf32>
      %69 = arith.select %63, %67, %68 : vector<32x128xi1>, vector<32x128xf32>
      %70 = vector.shape_cast %65 : vector<32x128xf32> to vector<4x8x128xf32>
      %cst_34 = arith.constant dense<0.000000e+00> : vector<8x128xf32>
      %71 = vector.multi_reduction <add>, %70, %cst_34 [0] : vector<4x8x128xf32> to vector<8x128xf32>
      %72 = arith.addf %9, %71 : vector<8x128xf32>
      %73 = vector.shape_cast %66 : vector<32x128xf32> to vector<4x8x128xf32>
      %cst_35 = arith.constant dense<0.000000e+00> : vector<8x128xf32>
      %74 = vector.multi_reduction <add>, %73, %cst_35 [0] : vector<4x8x128xf32> to vector<8x128xf32>
      %75 = arith.addf %13, %74 : vector<8x128xf32>
      %76 = vector.shape_cast %69 : vector<32x128xf32> to vector<4x8x128xf32>
      %cst_36 = arith.constant dense<0.000000e+00> : vector<8x128xf32>
      %77 = vector.multi_reduction <add>, %76, %cst_36 [0] : vector<4x8x128xf32> to vector<8x128xf32>
      %78 = arith.addf %17, %77 : vector<8x128xf32>
      %c0_37 = arith.constant 0 : index
      %c2 = arith.constant 2 : index
      %79 = arith.index_cast %21 : i32 to index
      %c0_38 = arith.constant 0 : index
      %80 = vector.load %arg3[%c0_37, %c2, %79, %c0_38] : memref<1x4x32x128xf32, #tpu.memory_space<vmem>>, vector<1x1x32x128xf32>
      %81 = vector.shape_cast %80 : vector<1x1x32x128xf32> to vector<32x128xf32>
      %cst_39 = arith.constant 0.000000e+00 : f32
      %82 = vector.broadcast %cst_39 : f32 to vector<32x128xf32>
      %83 = arith.select %32, %81, %82 : vector<32x128xi1>, vector<32x128xf32>
      %c2_i32 = arith.constant 2 : i32
      %84 = vector.broadcast %c2_i32 : i32 to vector<32x128xi32>
      %85 = arith.cmpi eq, %34, %84 : vector<32x128xi32>
      %cst_40 = arith.constant 0.000000e+00 : f32
      %86 = vector.broadcast %cst_40 : f32 to vector<32x128xf32>
      %87 = arith.select %85, %83, %86 : vector<32x128xi1>, vector<32x128xf32>
      %88 = arith.mulf %83, %83 : vector<32x128xf32>
      %cst_41 = arith.constant 1.000000e+00 : f32
      %cst_42 = arith.constant 0.000000e+00 : f32
      %89 = vector.broadcast %cst_41 : f32 to vector<32x128xf32>
      %90 = vector.broadcast %cst_42 : f32 to vector<32x128xf32>
      %91 = arith.select %85, %89, %90 : vector<32x128xi1>, vector<32x128xf32>
      %92 = vector.shape_cast %87 : vector<32x128xf32> to vector<4x8x128xf32>
      %cst_43 = arith.constant dense<0.000000e+00> : vector<8x128xf32>
      %93 = vector.multi_reduction <add>, %92, %cst_43 [0] : vector<4x8x128xf32> to vector<8x128xf32>
      %94 = arith.addf %10, %93 : vector<8x128xf32>
      %95 = vector.shape_cast %88 : vector<32x128xf32> to vector<4x8x128xf32>
      %cst_44 = arith.constant dense<0.000000e+00> : vector<8x128xf32>
      %96 = vector.multi_reduction <add>, %95, %cst_44 [0] : vector<4x8x128xf32> to vector<8x128xf32>
      %97 = arith.addf %14, %96 : vector<8x128xf32>
      %98 = vector.shape_cast %91 : vector<32x128xf32> to vector<4x8x128xf32>
      %cst_45 = arith.constant dense<0.000000e+00> : vector<8x128xf32>
      %99 = vector.multi_reduction <add>, %98, %cst_45 [0] : vector<4x8x128xf32> to vector<8x128xf32>
      %100 = arith.addf %18, %99 : vector<8x128xf32>
      %c0_46 = arith.constant 0 : index
      %c3 = arith.constant 3 : index
      %101 = arith.index_cast %21 : i32 to index
      %c0_47 = arith.constant 0 : index
      %102 = vector.load %arg3[%c0_46, %c3, %101, %c0_47] : memref<1x4x32x128xf32, #tpu.memory_space<vmem>>, vector<1x1x32x128xf32>
      %103 = vector.shape_cast %102 : vector<1x1x32x128xf32> to vector<32x128xf32>
      %cst_48 = arith.constant 0.000000e+00 : f32
      %104 = vector.broadcast %cst_48 : f32 to vector<32x128xf32>
      %105 = arith.select %32, %103, %104 : vector<32x128xi1>, vector<32x128xf32>
      %c3_i32_49 = arith.constant 3 : i32
      %106 = vector.broadcast %c3_i32_49 : i32 to vector<32x128xi32>
      %107 = arith.cmpi eq, %34, %106 : vector<32x128xi32>
      %cst_50 = arith.constant 0.000000e+00 : f32
      %108 = vector.broadcast %cst_50 : f32 to vector<32x128xf32>
      %109 = arith.select %107, %105, %108 : vector<32x128xi1>, vector<32x128xf32>
      %110 = arith.mulf %105, %105 : vector<32x128xf32>
      %cst_51 = arith.constant 1.000000e+00 : f32
      %cst_52 = arith.constant 0.000000e+00 : f32
      %111 = vector.broadcast %cst_51 : f32 to vector<32x128xf32>
      %112 = vector.broadcast %cst_52 : f32 to vector<32x128xf32>
      %113 = arith.select %107, %111, %112 : vector<32x128xi1>, vector<32x128xf32>
      %114 = vector.shape_cast %109 : vector<32x128xf32> to vector<4x8x128xf32>
      %cst_53 = arith.constant dense<0.000000e+00> : vector<8x128xf32>
      %115 = vector.multi_reduction <add>, %114, %cst_53 [0] : vector<4x8x128xf32> to vector<8x128xf32>
      %116 = arith.addf %11, %115 : vector<8x128xf32>
      %117 = vector.shape_cast %110 : vector<32x128xf32> to vector<4x8x128xf32>
      %cst_54 = arith.constant dense<0.000000e+00> : vector<8x128xf32>
      %118 = vector.multi_reduction <add>, %117, %cst_54 [0] : vector<4x8x128xf32> to vector<8x128xf32>
      %119 = arith.addf %15, %118 : vector<8x128xf32>
      %120 = vector.shape_cast %113 : vector<32x128xf32> to vector<4x8x128xf32>
      %cst_55 = arith.constant dense<0.000000e+00> : vector<8x128xf32>
      %121 = vector.multi_reduction <add>, %120, %cst_55 [0] : vector<4x8x128xf32> to vector<8x128xf32>
      %122 = arith.addf %19, %121 : vector<8x128xf32>
      %c1_i32_56 = arith.constant 1 : i32
      %c0_57 = arith.constant 0 : index
      %c0_58 = arith.constant 0 : index
      %c0_59 = arith.constant 0 : index
      %c0_60 = arith.constant 0 : index
      %c0_61 = arith.constant 0 : index
      %123 = vector.load %arg5[%c0_57, %c0_58, %c0_59, %c0_60, %c0_61] : memref<1x1x12x8x128xf32, #tpu.memory_space<vmem>>, vector<1x1x1x8x128xf32>
      %124 = vector.shape_cast %123 : vector<1x1x1x8x128xf32> to vector<8x128xf32>
      %125 = arith.addf %124, %50 : vector<8x128xf32>
      %c0_62 = arith.constant 0 : index
      %c0_63 = arith.constant 0 : index
      %c0_64 = arith.constant 0 : index
      %c0_65 = arith.constant 0 : index
      %c0_66 = arith.constant 0 : index
      %126 = vector.load %arg5[%c0_62, %c0_63, %c0_64, %c0_65, %c0_66] : memref<1x1x12x8x128xf32, #tpu.memory_space<vmem>>, vector<1x1x1x8x128xf32>
      %127 = vector.shape_cast %126 : vector<1x1x1x8x128xf32> to vector<8x128xf32>
      %128 = vector.shape_cast %125 : vector<8x128xf32> to vector<1x1x1x8x128xf32>
      tpu.vector_store %arg5[%c0_62, %c0_63, %c0_64, %c0_65, %c0_66], %128 {strides = array<i32>} : memref<1x1x12x8x128xf32, #tpu.memory_space<vmem>>, vector<1x1x1x8x128xf32>,
      %c0_67 = arith.constant 0 : index
      %c0_68 = arith.constant 0 : index
      %c1_69 = arith.constant 1 : index
      %c0_70 = arith.constant 0 : index
      %c0_71 = arith.constant 0 : index
      %129 = vector.load %arg5[%c0_67, %c0_68, %c1_69, %c0_70, %c0_71] : memref<1x1x12x8x128xf32, #tpu.memory_space<vmem>>, vector<1x1x1x8x128xf32>
      %130 = vector.shape_cast %129 : vector<1x1x1x8x128xf32> to vector<8x128xf32>
      %131 = arith.addf %130, %72 : vector<8x128xf32>
      %c0_72 = arith.constant 0 : index
      %c0_73 = arith.constant 0 : index
      %c1_74 = arith.constant 1 : index
      %c0_75 = arith.constant 0 : index
      %c0_76 = arith.constant 0 : index
      %132 = vector.load %arg5[%c0_72, %c0_73, %c1_74, %c0_75, %c0_76] : memref<1x1x12x8x128xf32, #tpu.memory_space<vmem>>, vector<1x1x1x8x128xf32>
      %133 = vector.shape_cast %132 : vector<1x1x1x8x128xf32> to vector<8x128xf32>
      %134 = vector.shape_cast %131 : vector<8x128xf32> to vector<1x1x1x8x128xf32>
      tpu.vector_store %arg5[%c0_72, %c0_73, %c1_74, %c0_75, %c0_76], %134 {strides = array<i32>} : memref<1x1x12x8x128xf32, #tpu.memory_space<vmem>>, vector<1x1x1x8x128xf32>,
      %c0_77 = arith.constant 0 : index
      %c0_78 = arith.constant 0 : index
      %c2_79 = arith.constant 2 : index
      %c0_80 = arith.constant 0 : index
      %c0_81 = arith.constant 0 : index
      %135 = vector.load %arg5[%c0_77, %c0_78, %c2_79, %c0_80, %c0_81] : memref<1x1x12x8x128xf32, #tpu.memory_space<vmem>>, vector<1x1x1x8x128xf32>
      %136 = vector.shape_cast %135 : vector<1x1x1x8x128xf32> to vector<8x128xf32>
      %137 = arith.addf %136, %94 : vector<8x128xf32>
      %c0_82 = arith.constant 0 : index
      %c0_83 = arith.constant 0 : index
      %c2_84 = arith.constant 2 : index
      %c0_85 = arith.constant 0 : index
      %c0_86 = arith.constant 0 : index
      %138 = vector.load %arg5[%c0_82, %c0_83, %c2_84, %c0_85, %c0_86] : memref<1x1x12x8x128xf32, #tpu.memory_space<vmem>>, vector<1x1x1x8x128xf32>
      %139 = vector.shape_cast %138 : vector<1x1x1x8x128xf32> to vector<8x128xf32>
      %140 = vector.shape_cast %137 : vector<8x128xf32> to vector<1x1x1x8x128xf32>
      tpu.vector_store %arg5[%c0_82, %c0_83, %c2_84, %c0_85, %c0_86], %140 {strides = array<i32>} : memref<1x1x12x8x128xf32, #tpu.memory_space<vmem>>, vector<1x1x1x8x128xf32>,
      %c0_87 = arith.constant 0 : index
      %c0_88 = arith.constant 0 : index
      %c3_89 = arith.constant 3 : index
      %c0_90 = arith.constant 0 : index
      %c0_91 = arith.constant 0 : index
      %141 = vector.load %arg5[%c0_87, %c0_88, %c3_89, %c0_90, %c0_91] : memref<1x1x12x8x128xf32, #tpu.memory_space<vmem>>, vector<1x1x1x8x128xf32>
      %142 = vector.shape_cast %141 : vector<1x1x1x8x128xf32> to vector<8x128xf32>
      %143 = arith.addf %142, %116 : vector<8x128xf32>
      %c0_92 = arith.constant 0 : index
      %c0_93 = arith.constant 0 : index
      %c3_94 = arith.constant 3 : index
      %c0_95 = arith.constant 0 : index
      %c0_96 = arith.constant 0 : index
      %144 = vector.load %arg5[%c0_92, %c0_93, %c3_94, %c0_95, %c0_96] : memref<1x1x12x8x128xf32, #tpu.memory_space<vmem>>, vector<1x1x1x8x128xf32>
      %145 = vector.shape_cast %144 : vector<1x1x1x8x128xf32> to vector<8x128xf32>
      %146 = vector.shape_cast %143 : vector<8x128xf32> to vector<1x1x1x8x128xf32>
      tpu.vector_store %arg5[%c0_92, %c0_93, %c3_94, %c0_95, %c0_96], %146 {strides = array<i32>} : memref<1x1x12x8x128xf32, #tpu.memory_space<vmem>>, vector<1x1x1x8x128xf32>,
      %c0_97 = arith.constant 0 : index
      %c0_98 = arith.constant 0 : index
      %c4 = arith.constant 4 : index
      %c0_99 = arith.constant 0 : index
      %c0_100 = arith.constant 0 : index
      %147 = vector.load %arg5[%c0_97, %c0_98, %c4, %c0_99, %c0_100] : memref<1x1x12x8x128xf32, #tpu.memory_space<vmem>>, vector<1x1x1x8x128xf32>
      %148 = vector.shape_cast %147 : vector<1x1x1x8x128xf32> to vector<8x128xf32>
      %149 = arith.addf %148, %53 : vector<8x128xf32>
      %c0_101 = arith.constant 0 : index
      %c0_102 = arith.constant 0 : index
      %c4_103 = arith.constant 4 : index
      %c0_104 = arith.constant 0 : index
      %c0_105 = arith.constant 0 : index
      %150 = vector.load %arg5[%c0_101, %c0_102, %c4_103, %c0_104, %c0_105] : memref<1x1x12x8x128xf32, #tpu.memory_space<vmem>>, vector<1x1x1x8x128xf32>
      %151 = vector.shape_cast %150 : vector<1x1x1x8x128xf32> to vector<8x128xf32>
      %152 = vector.shape_cast %149 : vector<8x128xf32> to vector<1x1x1x8x128xf32>
      tpu.vector_store %arg5[%c0_101, %c0_102, %c4_103, %c0_104, %c0_105], %152 {strides = array<i32>} : memref<1x1x12x8x128xf32, #tpu.memory_space<vmem>>, vector<1x1x1x8x128xf32>,
      %c0_106 = arith.constant 0 : index
      %c0_107 = arith.constant 0 : index
      %c5 = arith.constant 5 : index
      %c0_108 = arith.constant 0 : index
      %c0_109 = arith.constant 0 : index
      %153 = vector.load %arg5[%c0_106, %c0_107, %c5, %c0_108, %c0_109] : memref<1x1x12x8x128xf32, #tpu.memory_space<vmem>>, vector<1x1x1x8x128xf32>
      %154 = vector.shape_cast %153 : vector<1x1x1x8x128xf32> to vector<8x128xf32>
      %155 = arith.addf %154, %75 : vector<8x128xf32>
      %c0_110 = arith.constant 0 : index
      %c0_111 = arith.constant 0 : index
      %c5_112 = arith.constant 5 : index
      %c0_113 = arith.constant 0 : index
      %c0_114 = arith.constant 0 : index
      %156 = vector.load %arg5[%c0_110, %c0_111, %c5_112, %c0_113, %c0_114] : memref<1x1x12x8x128xf32, #tpu.memory_space<vmem>>, vector<1x1x1x8x128xf32>
      %157 = vector.shape_cast %156 : vector<1x1x1x8x128xf32> to vector<8x128xf32>
      %158 = vector.shape_cast %155 : vector<8x128xf32> to vector<1x1x1x8x128xf32>
      tpu.vector_store %arg5[%c0_110, %c0_111, %c5_112, %c0_113, %c0_114], %158 {strides = array<i32>} : memref<1x1x12x8x128xf32, #tpu.memory_space<vmem>>, vector<1x1x1x8x128xf32>,
      %c0_115 = arith.constant 0 : index
      %c0_116 = arith.constant 0 : index
      %c6 = arith.constant 6 : index
      %c0_117 = arith.constant 0 : index
      %c0_118 = arith.constant 0 : index
      %159 = vector.load %arg5[%c0_115, %c0_116, %c6, %c0_117, %c0_118] : memref<1x1x12x8x128xf32, #tpu.memory_space<vmem>>, vector<1x1x1x8x128xf32>
      %160 = vector.shape_cast %159 : vector<1x1x1x8x128xf32> to vector<8x128xf32>
      %161 = arith.addf %160, %97 : vector<8x128xf32>
      %c0_119 = arith.constant 0 : index
      %c0_120 = arith.constant 0 : index
      %c6_121 = arith.constant 6 : index
      %c0_122 = arith.constant 0 : index
      %c0_123 = arith.constant 0 : index
      %162 = vector.load %arg5[%c0_119, %c0_120, %c6_121, %c0_122, %c0_123] : memref<1x1x12x8x128xf32, #tpu.memory_space<vmem>>, vector<1x1x1x8x128xf32>
      %163 = vector.shape_cast %162 : vector<1x1x1x8x128xf32> to vector<8x128xf32>
      %164 = vector.shape_cast %161 : vector<8x128xf32> to vector<1x1x1x8x128xf32>
      tpu.vector_store %arg5[%c0_119, %c0_120, %c6_121, %c0_122, %c0_123], %164 {strides = array<i32>} : memref<1x1x12x8x128xf32, #tpu.memory_space<vmem>>, vector<1x1x1x8x128xf32>,
      %c0_124 = arith.constant 0 : index
      %c0_125 = arith.constant 0 : index
      %c7 = arith.constant 7 : index
      %c0_126 = arith.constant 0 : index
      %c0_127 = arith.constant 0 : index
      %165 = vector.load %arg5[%c0_124, %c0_125, %c7, %c0_126, %c0_127] : memref<1x1x12x8x128xf32, #tpu.memory_space<vmem>>, vector<1x1x1x8x128xf32>
      %166 = vector.shape_cast %165 : vector<1x1x1x8x128xf32> to vector<8x128xf32>
      %167 = arith.addf %166, %119 : vector<8x128xf32>
      %c0_128 = arith.constant 0 : index
      %c0_129 = arith.constant 0 : index
      %c7_130 = arith.constant 7 : index
      %c0_131 = arith.constant 0 : index
      %c0_132 = arith.constant 0 : index
      %168 = vector.load %arg5[%c0_128, %c0_129, %c7_130, %c0_131, %c0_132] : memref<1x1x12x8x128xf32, #tpu.memory_space<vmem>>, vector<1x1x1x8x128xf32>
      %169 = vector.shape_cast %168 : vector<1x1x1x8x128xf32> to vector<8x128xf32>
      %170 = vector.shape_cast %167 : vector<8x128xf32> to vector<1x1x1x8x128xf32>
      tpu.vector_store %arg5[%c0_128, %c0_129, %c7_130, %c0_131, %c0_132], %170 {strides = array<i32>} : memref<1x1x12x8x128xf32, #tpu.memory_space<vmem>>, vector<1x1x1x8x128xf32>,
      %c0_133 = arith.constant 0 : index
      %c0_134 = arith.constant 0 : index
      %c8 = arith.constant 8 : index
      %c0_135 = arith.constant 0 : index
      %c0_136 = arith.constant 0 : index
      %171 = vector.load %arg5[%c0_133, %c0_134, %c8, %c0_135, %c0_136] : memref<1x1x12x8x128xf32, #tpu.memory_space<vmem>>, vector<1x1x1x8x128xf32>
      %172 = vector.shape_cast %171 : vector<1x1x1x8x128xf32> to vector<8x128xf32>
      %173 = arith.addf %172, %56 : vector<8x128xf32>
      %c0_137 = arith.constant 0 : index
      %c0_138 = arith.constant 0 : index
      %c8_139 = arith.constant 8 : index
      %c0_140 = arith.constant 0 : index
      %c0_141 = arith.constant 0 : index
      %174 = vector.load %arg5[%c0_137, %c0_138, %c8_139, %c0_140, %c0_141] : memref<1x1x12x8x128xf32, #tpu.memory_space<vmem>>, vector<1x1x1x8x128xf32>
      %175 = vector.shape_cast %174 : vector<1x1x1x8x128xf32> to vector<8x128xf32>
      %176 = vector.shape_cast %173 : vector<8x128xf32> to vector<1x1x1x8x128xf32>
      tpu.vector_store %arg5[%c0_137, %c0_138, %c8_139, %c0_140, %c0_141], %176 {strides = array<i32>} : memref<1x1x12x8x128xf32, #tpu.memory_space<vmem>>, vector<1x1x1x8x128xf32>,
      %c0_142 = arith.constant 0 : index
      %c0_143 = arith.constant 0 : index
      %c9 = arith.constant 9 : index
      %c0_144 = arith.constant 0 : index
      %c0_145 = arith.constant 0 : index
      %177 = vector.load %arg5[%c0_142, %c0_143, %c9, %c0_144, %c0_145] : memref<1x1x12x8x128xf32, #tpu.memory_space<vmem>>, vector<1x1x1x8x128xf32>
      %178 = vector.shape_cast %177 : vector<1x1x1x8x128xf32> to vector<8x128xf32>
      %179 = arith.addf %178, %78 : vector<8x128xf32>
      %c0_146 = arith.constant 0 : index
      %c0_147 = arith.constant 0 : index
      %c9_148 = arith.constant 9 : index
      %c0_149 = arith.constant 0 : index
      %c0_150 = arith.constant 0 : index
      %180 = vector.load %arg5[%c0_146, %c0_147, %c9_148, %c0_149, %c0_150] : memref<1x1x12x8x128xf32, #tpu.memory_space<vmem>>, vector<1x1x1x8x128xf32>
      %181 = vector.shape_cast %180 : vector<1x1x1x8x128xf32> to vector<8x128xf32>
      %182 = vector.shape_cast %179 : vector<8x128xf32> to vector<1x1x1x8x128xf32>
      tpu.vector_store %arg5[%c0_146, %c0_147, %c9_148, %c0_149, %c0_150], %182 {strides = array<i32>} : memref<1x1x12x8x128xf32, #tpu.memory_space<vmem>>, vector<1x1x1x8x128xf32>,
      %c0_151 = arith.constant 0 : index
      %c0_152 = arith.constant 0 : index
      %c10 = arith.constant 10 : index
      %c0_153 = arith.constant 0 : index
      %c0_154 = arith.constant 0 : index
      %183 = vector.load %arg5[%c0_151, %c0_152, %c10, %c0_153, %c0_154] : memref<1x1x12x8x128xf32, #tpu.memory_space<vmem>>, vector<1x1x1x8x128xf32>
      %184 = vector.shape_cast %183 : vector<1x1x1x8x128xf32> to vector<8x128xf32>
      %185 = arith.addf %184, %100 : vector<8x128xf32>
      %c0_155 = arith.constant 0 : index
      %c0_156 = arith.constant 0 : index
      %c10_157 = arith.constant 10 : index
      %c0_158 = arith.constant 0 : index
      %c0_159 = arith.constant 0 : index
      %186 = vector.load %arg5[%c0_155, %c0_156, %c10_157, %c0_158, %c0_159] : memref<1x1x12x8x128xf32, #tpu.memory_space<vmem>>, vector<1x1x1x8x128xf32>
      %187 = vector.shape_cast %186 : vector<1x1x1x8x128xf32> to vector<8x128xf32>
      %188 = vector.shape_cast %185 : vector<8x128xf32> to vector<1x1x1x8x128xf32>
      tpu.vector_store %arg5[%c0_155, %c0_156, %c10_157, %c0_158, %c0_159], %188 {strides = array<i32>} : memref<1x1x12x8x128xf32, #tpu.memory_space<vmem>>, vector<1x1x1x8x128xf32>,
      %c0_160 = arith.constant 0 : index
      %c0_161 = arith.constant 0 : index
      %c11 = arith.constant 11 : index
      %c0_162 = arith.constant 0 : index
      %c0_163 = arith.constant 0 : index
      %189 = vector.load %arg5[%c0_160, %c0_161, %c11, %c0_162, %c0_163] : memref<1x1x12x8x128xf32, #tpu.memory_space<vmem>>, vector<1x1x1x8x128xf32>
      %190 = vector.shape_cast %189 : vector<1x1x1x8x128xf32> to vector<8x128xf32>
      %191 = arith.addf %190, %122 : vector<8x128xf32>
      %c0_164 = arith.constant 0 : index
      %c0_165 = arith.constant 0 : index
      %c11_166 = arith.constant 11 : index
      %c0_167 = arith.constant 0 : index
      %c0_168 = arith.constant 0 : index
      %192 = vector.load %arg5[%c0_164, %c0_165, %c11_166, %c0_167, %c0_168] : memref<1x1x12x8x128xf32, #tpu.memory_space<vmem>>, vector<1x1x1x8x128xf32>
      %193 = vector.shape_cast %192 : vector<1x1x1x8x128xf32> to vector<8x128xf32>
      %194 = vector.shape_cast %191 : vector<8x128xf32> to vector<1x1x1x8x128xf32>
      tpu.vector_store %arg5[%c0_164, %c0_165, %c11_166, %c0_167, %c0_168], %194 {strides = array<i32>} : memref<1x1x12x8x128xf32, #tpu.memory_space<vmem>>, vector<1x1x1x8x128xf32>,
    } else {
    }
    return
  }
  func.func @transform_0(%arg0: i32, %arg1: i32, %arg2: i32) -> (i32, i32, i32, i32) {
    %c3_i32 = arith.constant 3 : i32
    %0 = arith.muli %arg1, %c3_i32 : i32
    %1 = arith.addi %0, %arg2 : i32
    %c2_i32 = arith.constant 2 : i32
    %2 = arith.minsi %1, %c2_i32 : i32
    %c0_i32 = arith.constant 0 : i32
    %c0_i32_0 = arith.constant 0 : i32
    %c0_i32_1 = arith.constant 0 : i32
    return %arg0, %c0_i32, %2, %c0_i32_0 : i32, i32, i32, i32
  }
  func.func @transform_1(%arg0: i32, %arg1: i32, %arg2: i32) -> (i32, i32, i32) {
    %c3_i32 = arith.constant 3 : i32
    %0 = arith.muli %arg1, %c3_i32 : i32
    %1 = arith.addi %0, %arg2 : i32
    %c2_i32 = arith.constant 2 : i32
    %2 = arith.minsi %1, %c2_i32 : i32
    %c0_i32 = arith.constant 0 : i32
    %c0_i32_0 = arith.constant 0 : i32
    return %arg0, %2, %c0_i32 : i32, i32, i32
  }
  func.func @transform_2(%arg0: i32, %arg1: i32, %arg2: i32) -> (i32, i32, i32, i32, i32) {
    %c0_i32 = arith.constant 0 : i32
    %c0_i32_0 = arith.constant 0 : i32
    %c0_i32_1 = arith.constant 0 : i32
    %c0_i32_2 = arith.constant 0 : i32
    return %arg0, %arg1, %c0_i32, %c0_i32_0, %c0_i32_1 : i32, i32, i32, i32, i32
  }
}

</mosaic_0001>

<llo_original>
// kernel: tpu_custom_call.1
$region0: #{tpu_custom_call.1}
  #allocation0 [shape = 'u32[]', space=smem, size = 0x4, offset = 0x4, fixed_abs, tag = 'smem constant byte address 0x4 - core index']
  #allocation1 [shape = 'u32[144,128]{1,0:T(1,128)}', space=vmem, size = 0x12000, scoped, tag = 'internal scratch']
  #allocation8 [shape = 's32[]', space=sflag, size = 0x4, offset = 0, fixed_abs, tag = 'sflag constant byte address 0x0 - dummy sync flag']
  %s0 = inlined_call_operand.hbm [shape: f32[2,4,80,128], index: 0, kind: input, shape index: {}]
  %s1 = inlined_call_operand.hbm [shape: s8[2,80,128], index: 1, kind: input, shape index: {}]
  %s2 = inlined_call_operand.hbm [shape: f32[2,1,12,8,128], index: 2, kind: output, shape index: {}]
  %s3 = sld [smem:[#allocation0]]
  $region57: #{tpu_custom_call.1} parent=0
    _
  %s5 = ssub.s32 1, %s3
  %s6 = scalar_select 0, %s5, %s3
  $region1: #{tpu_custom_call.1} parent=0
    #allocation2 [shape = 'u8[131072]{0}', space=vmem, size = 0x20000, scoped, tag = 'input window, operand 0']
    #allocation3 [shape = 's32[2]{0}', space=sflag, size = 0x8, scoped, tag = 'scoped memory for tpu_custom_call.1']
    #allocation4 [shape = 's32[2]{0}', space=sflag, size = 0x8, scoped, tag = 'scoped memory for tpu_custom_call.1']
    #allocation5 [shape = 'u8[8192]{0}', space=vmem, size = 0x2000, scoped, tag = 'input window, operand 1']
    #allocation6 [shape = 's32[2]{0}', space=sflag, size = 0x8, scoped, tag = 'scoped memory for tpu_custom_call.1']
    #allocation7 [shape = 'u8[98304]{0}', space=vmem, size = 0x18000, scoped, tag = 'output window, operand 0']
    %7 = vsyncpa [#allocation3], 0
    %s8 = scalar_lea.sflag [#allocation3], 1
    %9 = vsyncpa %s8, 0
    %10 = vsyncpa [#allocation6], 0
    %s11 = scalar_lea.sflag [#allocation6], 1
    %12 = vsyncpa %s11, 0
    %13 = vsyncpa [#allocation4], 0
    %s14 = scalar_lea.sflag [#allocation4], 1
    %15 = vsyncpa %s14, 0
    loop: start=0, step=1, limit=8
    $region2: #{tpu_custom_call.1} parent=1 // loop_pre_header
      _
    $region3: #{tpu_custom_call.1} parent=1 // loop_header
      %s17 = sphi 0, %s21
      %p18 = scmp.ge.s32.totalorder %s17, 8
      %s24 = sphi 0, %s43
      %s25 = sphi 0, %s39
      %s26 = sphi 0, %s35
      %s27 = sphi 0, %s24
      %s28 = sphi 0, %s25
      %s29 = sphi 0, %s26
      %s30 = sphi 0, %s27
      %s31 = sphi 0, %s28
      %s32 = sphi 0, %s29
      %s56 = sphi 0, %s58
      %s59 = sphi 0, %s56
      %s60 = sphi 0, %s59
      %s76 = sphi 0, %s60
      %s92 = sphi 0, %s94
      %s95 = sphi 0, %s92
      %s96 = sphi 0, %s95
      %s112 = sphi 0, %s96
      %s120 = sphi 0, %s122
      %s123 = sphi 0, %s120
      %s124 = sphi 0, %s123
      %s140 = sphi 0, %s124
    $region4: #{tpu_custom_call.1} parent=1 // loop_header_branch
      %20 = sbr.rel (%p18) target = $region8
    $region5: #{tpu_custom_call.1} parent=1 // loop_body
      %s22 = ssub.s32 %s17, 1
      %s23 = ssub.s32 %s17, 2
      %s33 = sadd.s32 1, %s26
      %p34 = scmp.ge.s32.totalorder %s33, 3
      %s35 = scalar_select %p34, 0, %s33
      %s36 = sadd.s32 1, %s25
      %s37 = scalar_select %p34, %s36, %s25
      %p38 = scmp.ge.s32.totalorder %s37, 1
      %s39 = scalar_select %p38, 0, %s37
      %s40 = sadd.s32 1, %s24
      %s41 = scalar_select %p38, %s40, %s24
      %p42 = scmp.ge.s32.totalorder %s41, 2
      %s43 = scalar_select %p42, 0, %s41
      %s44 = smul.u32 %s25, 3
      %s45 = sadd.s32 %s44, %s26
      %p46 = scmp.lt.s32.totalorder %s45, 2
      %s47 = scalar_select %p46, %s45, 2
      %s48 = smul.u32 %s39, 3
      %s49 = sadd.s32 %s48, %s35
      %p50 = scmp.lt.s32.totalorder %s49, 2
      %s51 = scalar_select %p50, %s49, 2
      %s52 = ssub.s32 %s24, %s43
      %s53 = ssub.s32 %s47, %s51
      %s54 = sor.u32 %s52, %s53
      %p55 = scmp.eq.s32.totalorder %s54, 0
      %s57 = sadd.s32 %s56, 1
      %s58 = scalar_select %p55, %s56, %s57
      %p61 = pneg %p55
      %p62 = scmp.eq.s32.totalorder %s17, 5
      %p63 = por %p61, %p62
      %p64 = scmp.ne.s32.totalorder %s56, %s59
      %p65 = scmp.eq.s32.totalorder %s17, 0
      %p66 = por %p64, %p65
      %p67 = scmp.ne.s32.totalorder %s56, %s59
      %p68 = scmp.eq.s32.totalorder %s22, 5
      %p69 = por %p67, %p68
      %p70 = scmp.ne.s32.totalorder %s59, %s60
      %p71 = scmp.eq.s32.totalorder %s22, 0
      %p72 = por %p70, %p71
      %p73 = scmp.ne.s32.totalorder %s59, %s60
      %p74 = scmp.eq.s32.totalorder %s23, 5
      %p75 = por %p73, %p74
      %p77 = scmp.ne.s32.totalorder %s60, %s76
      %p78 = scmp.eq.s32.totalorder %s23, 0
      %p79 = por %p77, %p78
      %s80 = smul.u32 %s25, 3
      %s81 = sadd.s32 %s80, %s26
      %p82 = scmp.lt.s32.totalorder %s81, 2
      %s83 = scalar_select %p82, %s81, 2
      %s84 = smul.u32 %s39, 3
      %s85 = sadd.s32 %s84, %s35
      %p86 = scmp.lt.s32.totalorder %s85, 2
      %s87 = scalar_select %p86, %s85, 2
      %s88 = ssub.s32 %s24, %s43
      %s89 = ssub.s32 %s83, %s87
      %s90 = sor.u32 %s88, %s89
      %p91 = scmp.eq.s32.totalorder %s90, 0
      %s93 = sadd.s32 %s92, 1
      %s94 = scalar_select %p91, %s92, %s93
      %p97 = pneg %p91
      %p98 = scmp.eq.s32.totalorder %s17, 5
      %p99 = por %p97, %p98
      %p100 = scmp.ne.s32.totalorder %s92, %s95
      %p101 = scmp.eq.s32.totalorder %s17, 0
      %p102 = por %p100, %p101
      %p103 = scmp.ne.s32.totalorder %s92, %s95
      %p104 = scmp.eq.s32.totalorder %s22, 5
      %p105 = por %p103, %p104
      %p106 = scmp.ne.s32.totalorder %s95, %s96
      %p107 = scmp.eq.s32.totalorder %s22, 0
      %p108 = por %p106, %p107
      %p109 = scmp.ne.s32.totalorder %s95, %s96
      %p110 = scmp.eq.s32.totalorder %s23, 5
      %p111 = por %p109, %p110
      %p113 = scmp.ne.s32.totalorder %s96, %s112
      %p114 = scmp.eq.s32.totalorder %s23, 0
      %p115 = por %p113, %p114
      %s116 = ssub.s32 %s24, %s43
      %s117 = ssub.s32 %s25, %s39
      %s118 = sor.u32 %s116, %s117
      %p119 = scmp.eq.s32.totalorder %s118, 0
      %s121 = sadd.s32 %s120, 1
      %s122 = scalar_select %p119, %s120, %s121
      %p125 = pneg %p119
      %p126 = scmp.eq.s32.totalorder %s17, 5
      %p127 = por %p125, %p126
      %p128 = scmp.ne.s32.totalorder %s120, %s123
      %p129 = scmp.eq.s32.totalorder %s17, 0
      %p130 = por %p128, %p129
      %p131 = scmp.ne.s32.totalorder %s120, %s123
      %p132 = scmp.eq.s32.totalorder %s22, 5
      %p133 = por %p131, %p132
      %p134 = scmp.ne.s32.totalorder %s123, %s124
      %p135 = scmp.eq.s32.totalorder %s22, 0
      %p136 = por %p134, %p135
      %p137 = scmp.ne.s32.totalorder %s123, %s124
      %p138 = scmp.eq.s32.totalorder %s23, 5
      %p139 = por %p137, %p138
      %p141 = scmp.ne.s32.totalorder %s124, %s140
      %p142 = scmp.eq.s32.totalorder %s23, 0
      %p143 = por %p141, %p142
      %p144 = scmp.le.s32.totalorder 1, %s17
      %p145 = scmp.lt.s32.totalorder %s17, 7
      %p146 = pnand %p144, %p145
      %p147 = pneg %p146
      // Predicated region
      $region9: #{tpu_custom_call.1} parent=5 // pred_check
        _
      $region10: #{tpu_custom_call.1} parent=5 // pred_check_branch
        %149 = sbr.rel (%p146) target = $region12
      $region11: #{tpu_custom_call.1} parent=5 // pred_region
        %s150 = ssub.s32 %s17, 1
      $region12: #{tpu_custom_call.1} parent=5 // pred_fallthru
        _
      %p151 = scmp.lt.s32.totalorder %s17, 6
      // Predicated region
      $region13: #{tpu_custom_call.1} parent=5 // pred_check
        %p152 = pneg %p151
      $region14: #{tpu_custom_call.1} parent=5 // pred_check_branch
        %154 = sbr.rel (%p152) target = $region16
      $region15: #{tpu_custom_call.1} parent=5 // pred_region
        // Predicated region
        $region17: #{tpu_custom_call.1} parent=15 // pred_check
          %p155 = pneg %p66
        $region18: #{tpu_custom_call.1} parent=15 // pred_check_branch
          %157 = sbr.rel (%p155) target = $region20
        $region19: #{tpu_custom_call.1} parent=15 // pred_region
          #allocation9 [shape = 'u32[6]{0}', space=smem, size = 0x18, scoped, tag = 'DMA stride descriptor']
          %s158 = sand.u32 %s56, 1
          %s159 = scalar_lea.sflag [#allocation3], %s158
          %s160 = sand.u32 %s56, 1
          %s161 = smul.addr %s160, 128
          %s162 = scalar_lea.vmem [#allocation2], %s161
          %s163 = smul.u32 %s25, 3
          %s164 = sadd.s32 %s163, %s26
          %p165 = scmp.lt.s32.totalorder %s164, 2
          %s166 = scalar_select %p165, %s164, 2
          %s167 = smul.u32 4, %s166
          %s168 = ssub.s32 10, %s167
          %p169 = scmp.lt.s32.totalorder %s168, 4
          %s170 = scalar_select %p169, %s168, 4
          %s171 = smul.u32 512, %s170
          %s173 = ssub.s32 2048, %s171
          %174 = vsyncadd %s159, %s173
          %p175 = scmp.ne.s32.totalorder 0, %s171
          %s176 = smul.addr %s24, 40
          %s177 = sadd.s32 %s167, %s176
          %s178 = smul.addr %s177, 128
          %s179 = scalar_lea.hbm %s0, %s178
          %s180 = smul.u32 8, %s170
          %s181 = smul.u32 %s180, 4
          %s183 = sshll.u32 1, 14
          %s184 = sxor.u32 4294967295, %s183
          %s186 = sld [smem:[#allocation0]]
          %s187 = sadd.s32 2, %s186
          %s189 = sshll.u32 7, 26
          %s190 = sxor.u32 4294967295, %s189
          %s191 = sand.u32 0, %s190
          %s192 = sshll.u32 %s187, 26
          %s193 = sor.u32 %s191, %s192
          %s194 = sshll.u32 %s162, 4
          %s195 = int_to_ptr.vmem [resolvable:$true] %s194
          %s196 = sshll.u32 %s181, 4
          %201 = sst [smem:[#allocation9]] 1280
          %s202 = scalar_lea.smem [#allocation9], 1
          %203 = sst [smem:[%s202]] 512
          %s204 = scalar_lea.smem [#allocation9], 2
          %205 = sst [smem:[%s204]] %s170
          %s206 = scalar_lea.smem [#allocation9], 3
          %207 = sst [smem:[%s206]] 128
          %s208 = scalar_lea.smem [#allocation9], 4
          %209 = sst [smem:[%s208]] 128
          %s210 = scalar_lea.smem [#allocation9], 5
          %211 = sst [smem:[%s210]] 8
          %213 = dma.general (%p175), %s179, %s196, %s195, %s159, [#allocation8], [#allocation9], %s193, 0
        $region20: #{tpu_custom_call.1} parent=15 // pred_fallthru
          _
        // Predicated region
        $region21: #{tpu_custom_call.1} parent=15 // pred_check
          %p214 = pneg %p102
        $region22: #{tpu_custom_call.1} parent=15 // pred_check_branch
          %216 = sbr.rel (%p214) target = $region24
        $region23: #{tpu_custom_call.1} parent=15 // pred_region
          %s217 = sand.u32 %s92, 1
          %s218 = scalar_lea.sflag [#allocation6], %s217
          %s219 = sand.u32 %s92, 1
          %s220 = smul.addr %s219, 8
          %s221 = scalar_lea.vmem [#allocation5], %s220
          %s222 = smul.u32 %s25, 3
          %s223 = sadd.s32 %s222, %s26
          %p224 = scmp.lt.s32.totalorder %s223, 2
          %s225 = scalar_select %p224, %s223, 2
          %s226 = smul.u32 4, %s225
          %s227 = ssub.s32 10, %s226
          %p228 = scmp.lt.s32.totalorder %s227, 4
          %s229 = scalar_select %p228, %s227, 4
          %s230 = smul.u32 32, %s229
          %s232 = ssub.s32 128, %s230
          %233 = vsyncadd %s218, %s232
          %p234 = scmp.ne.s32.totalorder 0, %s230
          %s235 = smul.addr %s24, 10
          %s236 = sadd.s32 %s226, %s235
          %s237 = smul.addr %s236, 32
          %s238 = scalar_lea.hbm %s1, %s237
          %s239 = smul.u32 2, %s229
          %s240 = sshll.u32 %s221, 4
          %s241 = int_to_ptr.vmem [resolvable:$true] %s240
          %s242 = sshll.u32 %s239, 4
          %246 = dma.hbm_to_vmem [thread:$0]  (%p234), %s238, %s242, %s241, %s218, 32, 32, 2
        $region24: #{tpu_custom_call.1} parent=15 // pred_fallthru
          _
      $region16: #{tpu_custom_call.1} parent=5 // pred_fallthru
        _
      %p247 = scmp.le.s32.totalorder 1, %s17
      %p248 = scmp.lt.s32.totalorder %s17, 7
      %p249 = pnand %p247, %p248
      %p250 = pneg %p249
      // Predicated region
      $region25: #{tpu_custom_call.1} parent=5 // pred_check
        _
      $region26: #{tpu_custom_call.1} parent=5 // pred_check_branch
        %252 = sbr.rel (%p249) target = $region28
      $region27: #{tpu_custom_call.1} parent=5 // pred_region
        %s253 = ssub.s32 %s17, 1
        %s254 = sand.u32 %s59, 1
        %s255 = scalar_lea.sflag [#allocation3], %s254
        %s256 = sand.u32 %s59, 1
        %s257 = smul.addr %s256, 128
        %s258 = scalar_lea.vmem [#allocation2], %s257
        // Predicated region
        $region29: #{tpu_custom_call.1} parent=27 // pred_check
          %p259 = pneg %p72
        $region30: #{tpu_custom_call.1} parent=27 // pred_check_branch
          %261 = sbr.rel (%p259) target = $region32
        $region31: #{tpu_custom_call.1} parent=27 // pred_region
          %262 = dma.done %s255, 2048
        $region32: #{tpu_custom_call.1} parent=27 // pred_fallthru
          _
        %s263 = sand.u32 %s95, 1
        %s264 = scalar_lea.sflag [#allocation6], %s263
        %s265 = sand.u32 %s95, 1
        %s266 = smul.addr %s265, 8
        %s267 = scalar_lea.vmem [#allocation5], %s266
        // Predicated region
        $region33: #{tpu_custom_call.1} parent=27 // pred_check
          %p268 = pneg %p108
        $region34: #{tpu_custom_call.1} parent=27 // pred_check_branch
          %270 = sbr.rel (%p268) target = $region36
        $region35: #{tpu_custom_call.1} parent=27 // pred_region
          %271 = dma.done %s264, 128
        $region36: #{tpu_custom_call.1} parent=27 // pred_fallthru
          _
        %s272 = sand.u32 %s59, 1
        %s273 = scalar_lea.sflag [#allocation3], %s272
        %s274 = sand.u32 %s59, 1
        %s275 = smul.addr %s274, 128
        %s276 = scalar_lea.vmem [#allocation2], %s275
        %p277 = pneg %p72
        %p278 = pneg %p69
        %s279 = sand.u32 %s95, 1
        %s280 = scalar_lea.sflag [#allocation6], %s279
        %s281 = sand.u32 %s95, 1
        %s282 = smul.addr %s281, 8
        %s283 = scalar_lea.vmem [#allocation5], %s282
        %p284 = pneg %p108
        %p285 = pneg %p105
        %p286 = pneg %p136
        %p287 = pneg %p133
        %s288 = sand.u32 %s123, 1
        %s289 = scalar_lea.sflag [#allocation4], %s288
        %s290 = sand.u32 %s123, 1
        %s291 = smul.addr %s290, 96
        %s292 = scalar_lea.vmem [#allocation7], %s291
        %s293 = smul.u32 %s28, 3
        %s294 = sadd.s32 %s293, %s29
        %p295 = scmp.lt.s32.totalorder %s294, 2
        %s296 = scalar_select %p295, %s294, 2
        %s297 = smul.u32 4, %s296
        %s298 = ssub.s32 10, %s297
        %p299 = scmp.lt.s32.totalorder %s298, 4
        %s300 = scalar_select %p299, %s298, 4
        %s301 = smul.u32 512, %s300
        %s302 = smul.u32 %s28, 3
        %s303 = sadd.s32 %s302, %s29
        %p304 = scmp.lt.s32.totalorder %s303, 2
        %s305 = scalar_select %p304, %s303, 2
        %s306 = smul.u32 4, %s305
        %s307 = ssub.s32 10, %s306
        %p308 = scmp.lt.s32.totalorder %s307, 4
        %s309 = scalar_select %p308, %s307, 4
        %s310 = smul.u32 32, %s309
        %s311 = smul.u32 %s28, 3
        %s312 = sadd.s32 %s311, %s29
        %p313 = scmp.eq.s32.totalorder %s29, 0
        // Predicated region
        $region37: #{tpu_custom_call.1} parent=27 // pred_check
          %p314 = pneg %p313
        $region38: #{tpu_custom_call.1} parent=27 // pred_check_branch
          %316 = sbr.rel (%p314) target = $region40
        $region39: #{tpu_custom_call.1} parent=27 // pred_region
          %317 = vst [vmem:[%s292] sm:$0xff] 0.0
          %318 = vst [vmem:[%s292 + $0x8] sm:$0xff] 0.0
          %319 = vst [vmem:[%s292 + $0x10] sm:$0xff] 0.0
          %320 = vst [vmem:[%s292 + $0x18] sm:$0xff] 0.0
          %321 = vst [vmem:[%s292 + $0x20] sm:$0xff] 0.0
          %322 = vst [vmem:[%s292 + $0x28] sm:$0xff] 0.0
          %323 = vst [vmem:[%s292 + $0x30] sm:$0xff] 0.0
          %324 = vst [vmem:[%s292 + $0x38] sm:$0xff] 0.0
          %325 = vst [vmem:[%s292 + $0x40] sm:$0xff] 0.0
          %326 = vst [vmem:[%s292 + $0x48] sm:$0xff] 0.0
          %327 = vst [vmem:[%s292 + $0x50] sm:$0xff] 0.0
          %328 = vst [vmem:[%s292 + $0x58] sm:$0xff] 0.0
        $region40: #{tpu_custom_call.1} parent=27 // pred_fallthru
          _
        %p329 = scmp.lt.s32.totalorder %s312, 3
        // Predicated region
        $region41: #{tpu_custom_call.1} parent=27 // pred_check
          %p330 = pneg %p329
        $region42: #{tpu_custom_call.1} parent=27 // pred_check_branch
          %332 = sbr.rel (%p330) target = $region44
        $region43: #{tpu_custom_call.1} parent=27 // pred_region
          %v333 = vld [vmem:[%s267] sm:$0x3]
          %v334 = vld [vmem:[%s267 + $0x2] sm:$0x3]
          %v335 = vld [vmem:[%s267 + $0x4] sm:$0x3]
          %v336 = vld [vmem:[%s267 + $0x6] sm:$0x3]
          %v337 = vunpack.c.0.s8 %v333
          %v338 = vunpack.c.0.s8 %v334
          %v339 = vunpack.c.0.s8 %v335
          %v340 = vunpack.c.0.s8 %v336
          %s341 = smul.u32 %s312, 32
          %s342 = sadd.s32 %s341, 0
          %v343 = vlaneseq
          %v344 = vshrl.u32 %v343, 7
          %v345 = vadd.s32 %v344, 8
          %v346 = vadd.s32 %v344, 16
          %v347 = vadd.s32 %v344, 24
          %v348 = vstv %s342
          %v349 = vadd.s32 %v348, %v344
          %v350 = vadd.s32 %v348, %v345
          %v351 = vadd.s32 %v348, %v346
          %v352 = vadd.s32 %v348, %v347
          %vm353 = vcmp.lt.s32.totalorder %v349, 80
          %vm354 = vcmp.lt.s32.totalorder %v350, 80
          %vm355 = vcmp.lt.s32.totalorder %v351, 80
          %vm356 = vcmp.lt.s32.totalorder %v352, 80
          %v357 = vsel %vm353, %v337, 4294967295
          %v358 = vsel %vm354, %v338, 4294967295
          %v359 = vsel %vm355, %v339, 4294967295
          %v360 = vsel %vm356, %v340, 4294967295
          %v361 = vld [vmem:[%s258] sm:$0xff]
          %v362 = vld [vmem:[%s258 + $0x8] sm:$0xff]
          %v363 = vld [vmem:[%s258 + $0x10] sm:$0xff]
          %v364 = vld [vmem:[%s258 + $0x18] sm:$0xff]
          %v365 = vsel %vm353, %v361, 0.0
          %v366 = vsel %vm354, %v362, 0.0
          %v367 = vsel %vm355, %v363, 0.0
          %v368 = vsel %vm356, %v364, 0.0
          %vm369 = vcmp.eq.s32.totalorder %v357, 0
          %vm370 = vcmp.eq.s32.totalorder %v358, 0
          %vm371 = vcmp.eq.s32.totalorder %v359, 0
          %vm372 = vcmp.eq.s32.totalorder %v360, 0
          %v373 = vsel %vm369, %v365, 0.0
          %v374 = vsel %vm370, %v366, 0.0
          %v375 = vsel %vm371, %v367, 0.0
          %v376 = vsel %vm372, %v368, 0.0
          %v377 = vmul.f32 %v365, %v365
          %v378 = vmul.f32 %v366, %v366
          %v379 = vmul.f32 %v367, %v367
          %v380 = vmul.f32 %v368, %v368
          %v381 = vsel %vm369, 1.0, 0.0
          %v382 = vsel %vm370, 1.0, 0.0
          %v383 = vsel %vm371, 1.0, 0.0
          %v384 = vsel %vm372, 1.0, 0.0
          %v385 = vadd.f32 %v373, %v374
          %v386 = vadd.f32 %v385, %v375
          %v387 = vadd.f32 %v386, %v376
          %v388 = vadd.f32 %v387, 0.0
          %v389 = vadd.f32 %v377, %v378
          %v390 = vadd.f32 %v389, %v379
          %v391 = vadd.f32 %v390, %v380
          %v392 = vadd.f32 %v391, 0.0
          %v393 = vadd.f32 %v381, %v382
          %v394 = vadd.f32 %v393, %v383
          %v395 = vadd.f32 %v394, %v384
          %v396 = vadd.f32 %v395, 0.0
          %s397 = sadd.s32 0, 32
          %s398 = scalar_lea.vmem %s258, %s397 [#allocation2]
          %v399 = vld [vmem:[%s398] sm:$0xff]
          %v400 = vld [vmem:[%s398 + $0x8] sm:$0xff]
          %v401 = vld [vmem:[%s398 + $0x10] sm:$0xff]
          %v402 = vld [vmem:[%s398 + $0x18] sm:$0xff]
          %v403 = vsel %vm353, %v399, 0.0
          %v404 = vsel %vm354, %v400, 0.0
          %v405 = vsel %vm355, %v401, 0.0
          %v406 = vsel %vm356, %v402, 0.0
          %vm407 = vcmp.eq.s32.totalorder %v357, 1
          %vm408 = vcmp.eq.s32.totalorder %v358, 1
          %vm409 = vcmp.eq.s32.totalorder %v359, 1
          %vm410 = vcmp.eq.s32.totalorder %v360, 1
          %v411 = vsel %vm407, %v403, 0.0
          %v412 = vsel %vm408, %v404, 0.0
          %v413 = vsel %vm409, %v405, 0.0
          %v414 = vsel %vm410, %v406, 0.0
          %v415 = vmul.f32 %v403, %v403
          %v416 = vmul.f32 %v404, %v404
          %v417 = vmul.f32 %v405, %v405
          %v418 = vmul.f32 %v406, %v406
          %v419 = vsel %vm407, 1.0, 0.0
          %v420 = vsel %vm408, 1.0, 0.0
          %v421 = vsel %vm409, 1.0, 0.0
          %v422 = vsel %vm410, 1.0, 0.0
          %v423 = vadd.f32 %v411, %v412
          %v424 = vadd.f32 %v423, %v413
          %v425 = vadd.f32 %v424, %v414
          %v426 = vadd.f32 %v425, 0.0
          %v427 = vadd.f32 %v415, %v416
          %v428 = vadd.f32 %v427, %v417
          %v429 = vadd.f32 %v428, %v418
          %v430 = vadd.f32 %v429, 0.0
          %v431 = vadd.f32 %v419, %v420
          %v432 = vadd.f32 %v431, %v421
          %v433 = vadd.f32 %v432, %v422
          %v434 = vadd.f32 %v433, 0.0
          %s435 = sadd.s32 0, 64
          %s436 = scalar_lea.vmem %s258, %s435 [#allocation2]
          %v437 = vld [vmem:[%s436] sm:$0xff]
          %v438 = vld [vmem:[%s436 + $0x8] sm:$0xff]
          %v439 = vld [vmem:[%s436 + $0x10] sm:$0xff]
          %v440 = vld [vmem:[%s436 + $0x18] sm:$0xff]
          %v441 = vsel %vm353, %v437, 0.0
          %v442 = vsel %vm354, %v438, 0.0
          %v443 = vsel %vm355, %v439, 0.0
          %v444 = vsel %vm356, %v440, 0.0
          %vm445 = vcmp.eq.s32.totalorder %v357, 2
          %vm446 = vcmp.eq.s32.totalorder %v358, 2
          %vm447 = vcmp.eq.s32.totalorder %v359, 2
          %vm448 = vcmp.eq.s32.totalorder %v360, 2
          %v449 = vsel %vm445, %v441, 0.0
          %v450 = vsel %vm446, %v442, 0.0
          %v451 = vsel %vm447, %v443, 0.0
          %v452 = vsel %vm448, %v444, 0.0
          %v453 = vmul.f32 %v441, %v441
          %v454 = vmul.f32 %v442, %v442
          %v455 = vmul.f32 %v443, %v443
          %v456 = vmul.f32 %v444, %v444
          %v457 = vsel %vm445, 1.0, 0.0
          %v458 = vsel %vm446, 1.0, 0.0
          %v459 = vsel %vm447, 1.0, 0.0
          %v460 = vsel %vm448, 1.0, 0.0
          %v461 = vadd.f32 %v449, %v450
          %v462 = vadd.f32 %v461, %v451
          %v463 = vadd.f32 %v462, %v452
          %v464 = vadd.f32 %v463, 0.0
          %v465 = vadd.f32 %v453, %v454
          %v466 = vadd.f32 %v465, %v455
          %v467 = vadd.f32 %v466, %v456
          %v468 = vadd.f32 %v467, 0.0
          %v469 = vadd.f32 %v457, %v458
          %v470 = vadd.f32 %v469, %v459
          %v471 = vadd.f32 %v470, %v460
          %v472 = vadd.f32 %v471, 0.0
          %s473 = sadd.s32 0, 96
          %s474 = scalar_lea.vmem %s258, %s473 [#allocation2]
          %v475 = vld [vmem:[%s474] sm:$0xff]
          %v476 = vld [vmem:[%s474 + $0x8] sm:$0xff]
          %v477 = vld [vmem:[%s474 + $0x10] sm:$0xff]
          %v478 = vld [vmem:[%s474 + $0x18] sm:$0xff]
          %v479 = vsel %vm353, %v475, 0.0
          %v480 = vsel %vm354, %v476, 0.0
          %v481 = vsel %vm355, %v477, 0.0
          %v482 = vsel %vm356, %v478, 0.0
          %vm483 = vcmp.eq.s32.totalorder %v357, 3
          %vm484 = vcmp.eq.s32.totalorder %v358, 3
          %vm485 = vcmp.eq.s32.totalorder %v359, 3
          %vm486 = vcmp.eq.s32.totalorder %v360, 3
          %v487 = vsel %vm483, %v479, 0.0
          %v488 = vsel %vm484, %v480, 0.0
          %v489 = vsel %vm485, %v481, 0.0
          %v490 = vsel %vm486, %v482, 0.0
          %v491 = vmul.f32 %v479, %v479
          %v492 = vmul.f32 %v480, %v480
          %v493 = vmul.f32 %v481, %v481
          %v494 = vmul.f32 %v482, %v482
          %v495 = vsel %vm483, 1.0, 0.0
          %v496 = vsel %vm484, 1.0, 0.0
          %v497 = vsel %vm485, 1.0, 0.0
          %v498 = vsel %vm486, 1.0, 0.0
          %v499 = vadd.f32 %v487, %v488
          %v500 = vadd.f32 %v499, %v489
          %v501 = vadd.f32 %v500, %v490
          %v502 = vadd.f32 %v501, 0.0
          %v503 = vadd.f32 %v491, %v492
          %v504 = vadd.f32 %v503, %v493
          %v505 = vadd.f32 %v504, %v494
          %v506 = vadd.f32 %v505, 0.0
          %v507 = vadd.f32 %v495, %v496
          %v508 = vadd.f32 %v507, %v497
          %v509 = vadd.f32 %v508, %v498
          %v510 = vadd.f32 %v509, 0.0
          %v511 = vld [vmem:[%s292] sm:$0xff]
          %v512 = vadd.f32 %v511, %v388
          %513 = vst [vmem:[%s292] sm:$0xff] %v512
          %s514 = scalar_lea.vmem %s292, 8 [#allocation7]
          %v515 = vld [vmem:[%s514] sm:$0xff]
          %v516 = vadd.f32 %v515, %v426
          %517 = vst [vmem:[%s514] sm:$0xff] %v516
          %s518 = scalar_lea.vmem %s292, 16 [#allocation7]
          %v519 = vld [vmem:[%s518] sm:$0xff]
          %v520 = vadd.f32 %v519, %v464
          %521 = vst [vmem:[%s518] sm:$0xff] %v520
          %s522 = scalar_lea.vmem %s292, 24 [#allocation7]
          %v523 = vld [vmem:[%s522] sm:$0xff]
          %v524 = vadd.f32 %v523, %v502
          %525 = vst [vmem:[%s522] sm:$0xff] %v524
          %s526 = scalar_lea.vmem %s292, 32 [#allocation7]
          %v527 = vld [vmem:[%s526] sm:$0xff]
          %v528 = vadd.f32 %v527, %v392
          %529 = vst [vmem:[%s526] sm:$0xff] %v528
          %s530 = scalar_lea.vmem %s292, 40 [#allocation7]
          %v531 = vld [vmem:[%s530] sm:$0xff]
          %v532 = vadd.f32 %v531, %v430
          %533 = vst [vmem:[%s530] sm:$0xff] %v532
          %s534 = scalar_lea.vmem %s292, 48 [#allocation7]
          %v535 = vld [vmem:[%s534] sm:$0xff]
          %v536 = vadd.f32 %v535, %v468
          %537 = vst [vmem:[%s534] sm:$0xff] %v536
          %s538 = scalar_lea.vmem %s292, 56 [#allocation7]
          %v539 = vld [vmem:[%s538] sm:$0xff]
          %v540 = vadd.f32 %v539, %v506
          %541 = vst [vmem:[%s538] sm:$0xff] %v540
          %s542 = scalar_lea.vmem %s292, 64 [#allocation7]
          %v543 = vld [vmem:[%s542] sm:$0xff]
          %v544 = vadd.f32 %v543, %v396
          %545 = vst [vmem:[%s542] sm:$0xff] %v544
          %s546 = scalar_lea.vmem %s292, 72 [#allocation7]
          %v547 = vld [vmem:[%s546] sm:$0xff]
          %v548 = vadd.f32 %v547, %v434
          %549 = vst [vmem:[%s546] sm:$0xff] %v548
          %s550 = scalar_lea.vmem %s292, 80 [#allocation7]
          %v551 = vld [vmem:[%s550] sm:$0xff]
          %v552 = vadd.f32 %v551, %v472
          %553 = vst [vmem:[%s550] sm:$0xff] %v552
          %s554 = scalar_lea.vmem %s292, 88 [#allocation7]
          %v555 = vld [vmem:[%s554] sm:$0xff]
          %v556 = vadd.f32 %v555, %v510
          %557 = vst [vmem:[%s554] sm:$0xff] %v556
        $region44: #{tpu_custom_call.1} parent=27 // pred_fallthru
          _
        %s558 = sand.u32 %s123, 1
        %s559 = scalar_lea.sflag [#allocation4], %s558
        %s560 = sand.u32 %s123, 1
        %s561 = smul.addr %s560, 96
        %s562 = scalar_lea.vmem [#allocation7], %s561
        // Predicated region
        $region45: #{tpu_custom_call.1} parent=27 // pred_check
          %p563 = pneg %p133
        $region46: #{tpu_custom_call.1} parent=27 // pred_check_branch
          %565 = sbr.rel (%p563) target = $region48
        $region47: #{tpu_custom_call.1} parent=27 // pred_region
          %s567 = ssub.s32 1536, 1536
          %568 = vsyncadd %s559, %s567
          %s569 = smul.addr %s28, 12
          %s570 = smul.addr %s27, 12
          %s571 = sadd.s32 %s569, %s570
          %s572 = smul.addr %s571, 128
          %s573 = scalar_lea.hbm %s2, %s572
          %s574 = sshll.u32 %s562, 4
          %s575 = int_to_ptr.vmem [resolvable:$true] %s574
          %580 = dma.vmem_to_hbm [thread:$0]  %s575, 1536, %s573, %s559, 128, 128, 8
        $region48: #{tpu_custom_call.1} parent=27 // pred_fallthru
          _
      $region28: #{tpu_custom_call.1} parent=5 // pred_fallthru
        _
      %p581 = scmp.le.s32.totalorder 2, %s17
      // Predicated region
      $region49: #{tpu_custom_call.1} parent=5 // pred_check
        %p582 = pneg %p581
      $region50: #{tpu_custom_call.1} parent=5 // pred_check_branch
        %584 = sbr.rel (%p582) target = $region52
      $region51: #{tpu_custom_call.1} parent=5 // pred_region
        %s585 = ssub.s32 %s17, 2
        // Predicated region
        $region53: #{tpu_custom_call.1} parent=51 // pred_check
          %p586 = pneg %p139
        $region54: #{tpu_custom_call.1} parent=51 // pred_check_branch
          %588 = sbr.rel (%p586) target = $region56
        $region55: #{tpu_custom_call.1} parent=51 // pred_region
          %s589 = sand.u32 %s124, 1
          %s590 = scalar_lea.sflag [#allocation4], %s589
          %s591 = sand.u32 %s124, 1
          %s592 = smul.addr %s591, 96
          %s593 = scalar_lea.vmem [#allocation7], %s592
          %594 = dma.done %s590, 1536
        $region56: #{tpu_custom_call.1} parent=51 // pred_fallthru
          _
      $region52: #{tpu_custom_call.1} parent=5 // pred_fallthru
        _
    $region6: #{tpu_custom_call.1} parent=1 // loop_footer
      %s21 = sadd.s32 1, %s17
    $region7: #{tpu_custom_call.1} parent=1 // loop_footer_branch
      %16 = sbr.rel target = $region3
    $region8: #{tpu_custom_call.1} parent=1 // loop_exit
      _
    %595 = vsyncpa [#allocation3], 1
    %s596 = scalar_lea.sflag [#allocation3], 1
    %597 = vsyncpa %s596, 1
    %598 = vsyncpa [#allocation6], 1
    %s599 = scalar_lea.sflag [#allocation6], 1
    %600 = vsyncpa %s599, 1
    %601 = vsyncpa [#allocation4], 1
    %s602 = scalar_lea.sflag [#allocation4], 1
    %603 = vsyncpa %s602, 1

</llo_original>
